<compile_context>
chip_gen: v5e
topology: v5e:2x2
jax: 0.10.0
libtpu: 0.0.40
codegen_flags: <defaults>
</compile_context>

<pallas_src>
import jax
import jax.numpy as jnp
from jax.experimental import pallas as pl
from jax.experimental.pallas import tpu as pltpu

# ----- module hyper-parameters (N_COUNTIRES is an external constant in the
#       original file; picked deterministically here) -----
Z_DIM = 16
HIDDEN_DIM = 32
N_ANSWERS = 50 * 5          # 250  (real)
N_COUNTRIES = 32            # real
N_ANSWERS_PAD = 256         # lane-dense padding (multiple of 128)
N_COUNTRIES_PAD = 128       # lane-dense padding (multiple of 128)
HEAD_OUT = N_ANSWERS_PAD + N_COUNTRIES_PAD   # 384 fused head width
BATCH = 8
NEG_BIG = -1e30             # finite "minus infinity" baked into the head bias


def decoder_kernel(z_ref, w1_ref, b1_ref, wh_ref, bh_ref, out_ref):
    # z_ref: (B, Z_DIM) f32   w1_ref: (Z_DIM, H) bf16    b1_ref: (1, H) f32
    # wh_ref: (H, 384) bf16   bh_ref: (1, 384) f32       out_ref: (B, 384) f32
    z = z_ref[...]

    # ---- l1 + softplus (bf16 MXU matmul, f32 accumulation / activation) ----
    h = jnp.dot(z.astype(jnp.bfloat16), w1_ref[...],
                preferred_element_type=jnp.float32) + b1_ref[...]
    # numerically-stable softplus: log1p(exp(-|x|)) + max(x, 0)
    hidden = jnp.log1p(jnp.exp(-jnp.abs(h))) + jnp.maximum(h, 0.0)

    # ---- fused heads: one MXU push, one bias add, lane-dense 384-wide ----
    y = jnp.dot(hidden.astype(jnp.bfloat16), wh_ref[...],
                preferred_element_type=jnp.float32) + bh_ref[...]

    # answers head: sigmoid on lanes [0, 256) via tanh (single EUP op/vreg)
    la = y[:, :N_ANSWERS_PAD]
    out_ref[:, :N_ANSWERS_PAD] = 0.5 * jnp.tanh(0.5 * la) + 0.5

    # country head: softmax over lanes [256, 384); dead lanes carry a -1e30
    # bias (baked in by prepare_params), so exp() zeroes them with no explicit
    # mask.  Normalization is exact (no approx recip) -> rows sum to 1.
    lc = y[:, N_ANSWERS_PAD:]
    m = jnp.max(lc, axis=-1, keepdims=True)
    e = jnp.exp(lc - m)
    denom = jnp.sum(e, axis=-1, keepdims=True)
    out_ref[:, N_ANSWERS_PAD:] = e / denom


def prepare_params(params):
    """Fuse + lane-pad the head weights/bias; bake the country mask into the
    bias; cast weights to bf16.  Done once, outside the kernel."""
    w_head = jnp.zeros((HIDDEN_DIM, HEAD_OUT), jnp.float32)
    w_head = w_head.at[:, :N_ANSWERS].set(params["w21"])
    w_head = w_head.at[:, N_ANSWERS_PAD:N_ANSWERS_PAD + N_COUNTRIES].set(params["w22"])
    b_head = jnp.zeros((1, HEAD_OUT), jnp.float32)
    b_head = b_head.at[:, N_ANSWERS_PAD + N_COUNTRIES:].set(NEG_BIG)  # dead country lanes
    b_head = b_head.at[:, :N_ANSWERS].set(params["b21"][0])
    b_head = b_head.at[:, N_ANSWERS_PAD:N_ANSWERS_PAD + N_COUNTRIES].set(params["b22"][0])
    return {
        "w1": params["w1"].astype(jnp.bfloat16),
        "b1": params["b1"],
        "w_head": w_head.astype(jnp.bfloat16),
        "b_head": b_head,
    }


def decoder_forward(z, fused):
    """z: (B, Z_DIM) f32.  Returns one fused (B, 384) probability slab:
    answers in lanes [0, N_ANSWERS), countries in [256, 256 + N_COUNTRIES)."""
    B = z.shape[0]
    vmem = pl.BlockSpec(memory_space=pltpu.MemorySpace.VMEM)
    return pl.pallas_call(
        decoder_kernel,
        out_shape=jax.ShapeDtypeStruct((B, HEAD_OUT), jnp.float32),
        in_specs=[vmem] * 5,
        out_specs=vmem,
    )(z, fused["w1"], fused["b1"], fused["w_head"], fused["b_head"])


decoder_forward_jit = jax.jit(decoder_forward)


def init_params(key):
    """Deterministic synthetic parameters (PyTorch Linear init, stored transposed)."""
    ks = jax.random.split(key, 6)
    def lin(kw, kb, fan_in, fan_out):
        bound = 1.0 / jnp.sqrt(fan_in)
        w = jax.random.uniform(kw, (fan_in, fan_out), jnp.float32, -bound, bound)
        b = jax.random.uniform(kb, (1, fan_out), jnp.float32, -bound, bound)
        return w, b
    w1, b1 = lin(ks[0], ks[1], Z_DIM, HIDDEN_DIM)
    w21, b21 = lin(ks[2], ks[3], HIDDEN_DIM, N_ANSWERS)
    w22, b22 = lin(ks[4], ks[5], HIDDEN_DIM, N_COUNTRIES)
    return {"w1": w1, "b1": b1, "w21": w21, "b21": b21, "w22": w22, "b22": b22}


def decoder_ref_f32(z, p):
    """Full-f32 reference (original module semantics)."""
    h = jax.nn.softplus(z @ p["w1"] + p["b1"])
    ans = jax.nn.sigmoid(h @ p["w21"] + p["b21"])
    country = jax.nn.softmax(h @ p["w22"] + p["b22"], axis=-1)
    return ans, country


def decoder_ref_kernel_precision(z, fused):
    """Pure-JAX reference at the kernel's precision (bf16 MXU inputs, f32 math)."""
    h = jnp.dot(z.astype(jnp.bfloat16), fused["w1"],
                preferred_element_type=jnp.float32) + fused["b1"]
    hidden = jax.nn.softplus(h)
    y = jnp.dot(hidden.astype(jnp.bfloat16), fused["w_head"],
                preferred_element_type=jnp.float32) + fused["b_head"]
    ans = jax.nn.sigmoid(y[:, :N_ANSWERS])
    country = jax.nn.softmax(y[:, N_ANSWERS_PAD:N_ANSWERS_PAD + N_COUNTRIES], axis=-1)
    return ans, country


if __name__ == "__main__":
    key = jax.random.PRNGKey(0)
    kz, kp = jax.random.split(key)
    z = jax.random.normal(kz, (BATCH, Z_DIM), jnp.float32)
    params = init_params(kp)
    fused = prepare_params(params)

    out = decoder_forward_jit(z, fused)
    jax.block_until_ready(out)

    # Slice the fused slab only here, at the final consumer (outside the jit).
    ans = out[:, :N_ANSWERS]
    country = out[:, N_ANSWERS_PAD:N_ANSWERS_PAD + N_COUNTRIES]
    assert ans.shape == (BATCH, N_ANSWERS)
    assert country.shape == (BATCH, N_COUNTRIES)

    # Tight check against a reference at the kernel's own (bf16-weight) precision.
    ans_k, country_k = decoder_ref_kernel_precision(z, fused)
    assert jnp.allclose(ans, ans_k, atol=1e-3, rtol=1e-3)
    assert jnp.allclose(country, country_k, atol=1e-3, rtol=1e-3)

    # Loose sanity check against the full-f32 reference (covers bf16 weight rounding).
    ans_f, country_f = decoder_ref_f32(z, params)
    assert jnp.allclose(ans, ans_f, atol=2e-2, rtol=2e-2)
    assert jnp.allclose(country, country_f, atol=2e-2, rtol=2e-2)

    # Exact softmax normalization -> rows sum to 1 to f32 precision.
    assert jnp.allclose(jnp.sum(country, axis=-1), 1.0, atol=1e-4)

    print("KERNEL_OK")
</pallas_src>

<mosaic_0001>
module attributes {stable_mosaic.version = 11 : i64} {
  func.func @decoder_kernel(%arg0: memref<8x16xf32, #tpu.memory_space<vmem>>, %arg1: memref<16x32xbf16, #tpu.memory_space<vmem>>, %arg2: memref<1x32xf32, #tpu.memory_space<vmem>>, %arg3: memref<32x384xbf16, #tpu.memory_space<vmem>>, %arg4: memref<1x384xf32, #tpu.memory_space<vmem>>, %arg5: memref<8x384xf32, #tpu.memory_space<vmem>>) attributes {dimension_semantics = [], scalar_prefetch = 0 : i64, scratch_operands = 0 : i64, tpu.core_type = #tpu.core_type<tc>} {
    %c0 = arith.constant 0 : index
    %c0_0 = arith.constant 0 : index
    %0 = vector.load %arg0[%c0, %c0_0] : memref<8x16xf32, #tpu.memory_space<vmem>>, vector<8x16xf32>
    %1 = arith.truncf %0 : vector<8x16xf32> to vector<8x16xbf16>
    %c0_1 = arith.constant 0 : index
    %c0_2 = arith.constant 0 : index
    %2 = vector.load %arg1[%c0_1, %c0_2] : memref<16x32xbf16, #tpu.memory_space<vmem>>, vector<16x32xbf16>
    %cst = arith.constant dense<0.000000e+00> : vector<8x32xf32>
    %3 = tpu.matmul %1, %2, %cst {dimension_numbers = #tpu.dot_dimension_numbers<[1], [0], [0], [1], [0, 0, 1, 1], [], []>} : vector<8x16xbf16>, vector<16x32xbf16>, vector<8x32xf32> -> vector<8x32xf32>
    %c0_3 = arith.constant 0 : index
    %c0_4 = arith.constant 0 : index
    %4 = vector.load %arg2[%c0_3, %c0_4] : memref<1x32xf32, #tpu.memory_space<vmem>>, vector<1x32xf32>
    %5 = vector.broadcast %4 : vector<1x32xf32> to vector<8x32xf32>
    %6 = arith.addf %3, %5 : vector<8x32xf32>
    %7 = math.absf %6 : vector<8x32xf32>
    %cst_5 = arith.constant 0.000000e+00 : f32
    %8 = vector.broadcast %cst_5 : f32 to vector<8x32xf32>
    %9 = arith.subf %8, %7 : vector<8x32xf32>
    %10 = math.exp %9 : vector<8x32xf32>
    %11 = math.log1p %10 : vector<8x32xf32>
    %cst_6 = arith.constant 0.000000e+00 : f32
    %12 = vector.broadcast %cst_6 : f32 to vector<8x32xf32>
    %13 = arith.maximumf %6, %12 : vector<8x32xf32>
    %14 = arith.addf %11, %13 : vector<8x32xf32>
    %15 = arith.truncf %14 : vector<8x32xf32> to vector<8x32xbf16>
    %c0_7 = arith.constant 0 : index
    %c0_8 = arith.constant 0 : index
    %16 = vector.load %arg3[%c0_7, %c0_8] : memref<32x384xbf16, #tpu.memory_space<vmem>>, vector<32x384xbf16>
    %cst_9 = arith.constant dense<0.000000e+00> : vector<8x384xf32>
    %17 = tpu.matmul %15, %16, %cst_9 {dimension_numbers = #tpu.dot_dimension_numbers<[1], [0], [0], [1], [0, 0, 1, 1], [], []>} : vector<8x32xbf16>, vector<32x384xbf16>, vector<8x384xf32> -> vector<8x384xf32>
    %c0_10 = arith.constant 0 : index
    %c0_11 = arith.constant 0 : index
    %18 = vector.load %arg4[%c0_10, %c0_11] : memref<1x384xf32, #tpu.memory_space<vmem>>, vector<1x384xf32>
    %19 = vector.broadcast %18 : vector<1x384xf32> to vector<8x384xf32>
    %20 = arith.addf %17, %19 : vector<8x384xf32>
    %21 = vector.extract_strided_slice %20 {offsets = [0, 0], sizes = [8, 256], strides = [1, 1]} : vector<8x384xf32> to vector<8x256xf32>
    %cst_12 = arith.constant 5.000000e-01 : f32
    %22 = vector.broadcast %cst_12 : f32 to vector<8x256xf32>
    %23 = arith.mulf %22, %21 : vector<8x256xf32>
    %24 = math.tanh %23 : vector<8x256xf32>
    %cst_13 = arith.constant 5.000000e-01 : f32
    %25 = vector.broadcast %cst_13 : f32 to vector<8x256xf32>
    %26 = arith.mulf %25, %24 : vector<8x256xf32>
    %cst_14 = arith.constant 5.000000e-01 : f32
    %27 = vector.broadcast %cst_14 : f32 to vector<8x256xf32>
    %28 = arith.addf %26, %27 : vector<8x256xf32>
    %c0_15 = arith.constant 0 : index
    %c0_16 = arith.constant 0 : index
    %29 = vector.load %arg5[%c0_15, %c0_16] : memref<8x384xf32, #tpu.memory_space<vmem>>, vector<8x256xf32>
    tpu.vector_store %arg5[%c0_15, %c0_16], %28 {strides = array<i32>} : memref<8x384xf32, #tpu.memory_space<vmem>>, vector<8x256xf32>,
    %30 = vector.extract_strided_slice %20 {offsets = [0, 256], sizes = [8, 128], strides = [1, 1]} : vector<8x384xf32> to vector<8x128xf32>
    %cst_17 = arith.constant dense<0xFF800000> : vector<8xf32>
    %31 = vector.multi_reduction <maximumf>, %30, %cst_17 [1] : vector<8x128xf32> to vector<8xf32>
    %32 = vector.shape_cast %31 : vector<8xf32> to vector<8x1xf32>
    %33 = vector.broadcast %32 : vector<8x1xf32> to vector<8x128xf32>
    %34 = arith.subf %30, %33 : vector<8x128xf32>
    %35 = math.exp %34 : vector<8x128xf32>
    %cst_18 = arith.constant dense<0.000000e+00> : vector<8xf32>
    %36 = vector.multi_reduction <add>, %35, %cst_18 [1] : vector<8x128xf32> to vector<8xf32>
    %37 = vector.shape_cast %36 : vector<8xf32> to vector<8x1xf32>
    %38 = vector.broadcast %37 : vector<8x1xf32> to vector<8x128xf32>
    %39 = arith.divf %35, %38 : vector<8x128xf32>
    %c0_19 = arith.constant 0 : index
    %c256 = arith.constant 256 : index
    %40 = vector.load %arg5[%c0_19, %c256] : memref<8x384xf32, #tpu.memory_space<vmem>>, vector<8x128xf32>
    tpu.vector_store %arg5[%c0_19, %c256], %39 {strides = array<i32>} : memref<8x384xf32, #tpu.memory_space<vmem>>, vector<8x128xf32>,
    return
  }
}

</mosaic_0001>

<llo_original>
// kernel: decoder_forward.1
$region0: #{decoder_forward.1}
  #allocation0 [shape = 'u32[]', space=smem, size = 0x4, offset = 0x4, fixed_abs, tag = 'smem constant byte address 0x4 - core index']
  #allocation1 [shape = 'u32[72,128]{1,0:T(1,128)}', space=vmem, size = 0x9000, scoped, tag = 'internal scratch']
  %s0 = inlined_call_operand.hbm [shape: f32[8,16], index: 0, kind: input, shape index: {}]
  %s1 = inlined_call_operand.hbm [shape: bf16[16,32], index: 1, kind: input, shape index: {}]
  %s2 = inlined_call_operand.hbm [shape: f32[1,32], index: 2, kind: input, shape index: {}]
  %s3 = inlined_call_operand.hbm [shape: bf16[32,384], index: 3, kind: input, shape index: {}]
  %s4 = inlined_call_operand.hbm [shape: f32[1,384], index: 4, kind: input, shape index: {}]
  %s5 = inlined_call_operand.hbm [shape: f32[8,384], index: 5, kind: output, shape index: {}]
  %s6 = sld [smem:[#allocation0]]
  $region50: #{decoder_forward.1} parent=0
    _
  %s8 = ssub.s32 1, %s6
  %s9 = scalar_select 0, %s8, %s6
  $region1: #{decoder_forward.1} parent=0
    #allocation2 [shape = 'u8[4096]{0}', space=vmem, size = 0x1000, scoped, tag = 'input window, operand 0, single buffered']
    #allocation3 [shape = 's32[1]{0}', space=sflag, size = 0x4, scoped, tag = 'scoped memory for decoder_forward.1']
    #allocation4 [shape = 's32[1]{0}', space=sflag, size = 0x4, scoped, tag = 'scoped memory for decoder_forward.1']
    #allocation5 [shape = 'u8[4096]{0}', space=vmem, size = 0x1000, scoped, tag = 'input window, operand 1, single buffered']
    #allocation6 [shape = 's32[1]{0}', space=sflag, size = 0x4, scoped, tag = 'scoped memory for decoder_forward.1']
    #allocation7 [shape = 'u8[512]{0}', space=vmem, size = 0x400, scoped, tag = 'input window, operand 2, single buffered']
    #allocation8 [shape = 'u8[24576]{0}', space=vmem, size = 0x6000, scoped, tag = 'input window, operand 3, single buffered']
    #allocation9 [shape = 's32[1]{0}', space=sflag, size = 0x4, scoped, tag = 'scoped memory for decoder_forward.1']
    #allocation10 [shape = 'u8[1536]{0}', space=vmem, size = 0x800, scoped, tag = 'input window, operand 4, single buffered']
    #allocation11 [shape = 'u8[12288]{0}', space=vmem, size = 0x3000, scoped, tag = 'output window, operand 0, single buffered']
    %10 = vsyncpa [#allocation3], 0
    %11 = vsyncpa [#allocation6], 0
    %12 = vsyncpa [#allocation9], 0
    %13 = vsyncpa [#allocation4], 0
    // Predicated region
    $region2: #{decoder_forward.1} parent=1 // pred_check
      _
    $region3: #{decoder_forward.1} parent=1 // pred_check_branch
      %15 = sbr.rel (0) target = $region5
    $region4: #{decoder_forward.1} parent=1 // pred_region
      %17 = vsyncadd [#allocation3], 0
      %s19 = sshll.u32 %s0, 4
      %s20 = int_to_ptr.hbm [resolvable:$true] %s19
      %s21 = sshll.u32 [#allocation2], 4
      %s22 = int_to_ptr.vmem [resolvable:$true] %s21
      %24 = dma.hbm_to_vmem [thread:$0]  %s20, 128, %s22, [#allocation3]
    $region5: #{decoder_forward.1} parent=1 // pred_fallthru
      _
    // Predicated region
    $region6: #{decoder_forward.1} parent=1 // pred_check
      _
    $region7: #{decoder_forward.1} parent=1 // pred_check_branch
      %26 = sbr.rel (0) target = $region9
    $region8: #{decoder_forward.1} parent=1 // pred_region
      %28 = vsyncadd [#allocation6], 0
      %s29 = sshll.u32 %s1, 4
      %s30 = int_to_ptr.hbm [resolvable:$true] %s29
      %s31 = sshll.u32 [#allocation5], 4
      %s32 = int_to_ptr.vmem [resolvable:$true] %s31
      %37 = dma.hbm_to_vmem [thread:$0]  %s30, 128, %s32, [#allocation6], 64, 64, 4
    $region9: #{decoder_forward.1} parent=1 // pred_fallthru
      _
    // Predicated region
    $region10: #{decoder_forward.1} parent=1 // pred_check
      _
    $region11: #{decoder_forward.1} parent=1 // pred_check_branch
      %39 = sbr.rel (0) target = $region13
    $region12: #{decoder_forward.1} parent=1 // pred_region
      %41 = vsyncadd [#allocation6], 0
      %s43 = sshll.u32 %s2, 4
      %s44 = int_to_ptr.hbm [resolvable:$true] %s43
      %s45 = sshll.u32 [#allocation7], 4
      %s46 = int_to_ptr.vmem [resolvable:$true] %s45
      %48 = dma.hbm_to_vmem [thread:$0]  %s44, 16, %s46, [#allocation6]
    $region13: #{decoder_forward.1} parent=1 // pred_fallthru
      _
    // Predicated region
    $region14: #{decoder_forward.1} parent=1 // pred_check
      _
    $region15: #{decoder_forward.1} parent=1 // pred_check_branch
      %50 = sbr.rel (0) target = $region17
    $region16: #{decoder_forward.1} parent=1 // pred_region
      %52 = vsyncadd [#allocation9], 0
      %s53 = sshll.u32 %s3, 4
      %s54 = int_to_ptr.hbm [resolvable:$true] %s53
      %s55 = sshll.u32 [#allocation8], 4
      %s56 = int_to_ptr.vmem [resolvable:$true] %s55
      %61 = dma.hbm_to_vmem [thread:$0]  %s54, 768, %s56, [#allocation9], 192, 192, 12
    $region17: #{decoder_forward.1} parent=1 // pred_fallthru
      _
    // Predicated region
    $region18: #{decoder_forward.1} parent=1 // pred_check
      _
    $region19: #{decoder_forward.1} parent=1 // pred_check_branch
      %63 = sbr.rel (0) target = $region21
    $region20: #{decoder_forward.1} parent=1 // pred_region
      %65 = vsyncadd [#allocation9], 0
      %s67 = sshll.u32 %s4, 4
      %s68 = int_to_ptr.hbm [resolvable:$true] %s67
      %s69 = sshll.u32 [#allocation10], 4
      %s70 = int_to_ptr.vmem [resolvable:$true] %s69
      %72 = dma.hbm_to_vmem [thread:$0]  %s68, 48, %s70, [#allocation9]
    $region21: #{decoder_forward.1} parent=1 // pred_fallthru
      _
    // Predicated region
    $region22: #{decoder_forward.1} parent=1 // pred_check
      _
    $region23: #{decoder_forward.1} parent=1 // pred_check_branch
      %74 = sbr.rel (0) target = $region25
    $region24: #{decoder_forward.1} parent=1 // pred_region
      %76 = dma.done [#allocation3], 128
    $region25: #{decoder_forward.1} parent=1 // pred_fallthru
      _
    // Predicated region
    $region26: #{decoder_forward.1} parent=1 // pred_check
      _
    $region27: #{decoder_forward.1} parent=1 // pred_check_branch
      %78 = sbr.rel (0) target = $region29
    $region28: #{decoder_forward.1} parent=1 // pred_region
      %80 = dma.done [#allocation6], 128
    $region29: #{decoder_forward.1} parent=1 // pred_fallthru
      _
    // Predicated region
    $region30: #{decoder_forward.1} parent=1 // pred_check
      _
    $region31: #{decoder_forward.1} parent=1 // pred_check_branch
      %82 = sbr.rel (0) target = $region33
    $region32: #{decoder_forward.1} parent=1 // pred_region
      %84 = dma.done [#allocation6], 16
    $region33: #{decoder_forward.1} parent=1 // pred_fallthru
      _
    // Predicated region
    $region34: #{decoder_forward.1} parent=1 // pred_check
      _
    $region35: #{decoder_forward.1} parent=1 // pred_check_branch
      %86 = sbr.rel (0) target = $region37
    $region36: #{decoder_forward.1} parent=1 // pred_region
      %88 = dma.done [#allocation9], 768
    $region37: #{decoder_forward.1} parent=1 // pred_fallthru
      _
    // Predicated region
    $region38: #{decoder_forward.1} parent=1 // pred_check
      _
    $region39: #{decoder_forward.1} parent=1 // pred_check_branch
      %90 = sbr.rel (0) target = $region41
    $region40: #{decoder_forward.1} parent=1 // pred_region
      %92 = dma.done [#allocation9], 48
    $region41: #{decoder_forward.1} parent=1 // pred_fallthru
      _
    %v94 = vld [vmem:[#allocation2] sm:$0xff]
    %v95 = vpack.c.bf16 %v94, %v94
    %v96 = vld [vmem:[#allocation5] sm:$0xf]
    %v97 = vld [vmem:[#allocation5 + $0x4] sm:$0xf]
    %v98 = vld [vmem:[#allocation7] sm:$0x1]
    %v100 = vperm.slane %v98, 0
    %v104 = vunpack.c.l.b16 %v96
    %v105 = vunpack.c.l.b16 %v97
    %v106 = vpack.c.b16 %v105, %v104
    %vm108 = vcmask 130048
    %v110 = vsel %vm108, %v95, 0
    %112 = vmatpush.bf16.msra.mxu0 0
    %113 = vmatpush.bf16.msra.mxu0 0
    %114 = vmatpush.bf16.msra.mxu0 0
    %115 = vmatpush.bf16.msra.mxu0 0
    %116 = vmatpush.bf16.msra.mxu0 0
    %117 = vmatpush.bf16.msra.mxu0 0
    %118 = vmatpush.bf16.msra.mxu0 0
    %119 = vmatpush.bf16.msra.mxu0 %v106
    %120 = vmatmul.bf16.gmra.mxu0 %v110
    %v121 = vpop.f32.mrf.mxu0
    %v122 = vadd.f32 %v100, %v121
    %v123 = vpop.f32.mrf.mxu0
    %124 = vdwg.mxu0
    %v125 = vand.u32 2147483647, %v122
    %v126 = vsub.f32 0.0, %v125
    %v127 = vmul.f32 %v126, 1.442695
    %v128 = vpow.pop %v127
    %v129 = vadd.f32 %v128, 1.0
    %v130 = vlog2.pop %v129
    %v131 = vmul.f32 %v130, 0.6931472
    %v132 = vmul.f32 -0.5, %v128
    %v133 = vadd.f32 %v132, 1.0
    %v134 = vmul.f32 %v133, %v128
    %v135 = vand.u32 2147483647, %v128
    %vm136 = vcmp.lt.f32.partialorder %v135, 0.0004427343
    %v137 = vsel %vm136, %v134, %v131
    %v138 = vmax.f32 %v122, 0.0
    %v139 = vadd.f32 %v137, %v138
    %v140 = vpack.c.bf16 %v139, %v139
    %v141 = vld [vmem:[#allocation8] sm:$0xff]
    %v142 = vld [vmem:[#allocation8 + $0x8] sm:$0xf]
    %v143 = vld [vmem:[#allocation8 + $0xc] sm:$0xff]
    %v144 = vld [vmem:[#allocation8 + $0x14] sm:$0xf]
    %v145 = vld [vmem:[#allocation8 + $0x18] sm:$0xff]
    %v146 = vld [vmem:[#allocation8 + $0x20] sm:$0xf]
    %v147 = vld [vmem:[#allocation8 + $0x24] sm:$0xff]
    %v148 = vld [vmem:[#allocation8 + $0x2c] sm:$0xf]
    %v149 = vld [vmem:[#allocation10] sm:$0x7]
    %v151 = vperm.slane %v149, 0
    %v152 = vperm.slane %v149, 1
    %v153 = vperm.slane %v149, 2
    %v165 = vunpack.c.l.b16 %v141
    %v166 = vunpack.c.h.b16 %v141
    %v167 = vunpack.c.l.b16 %v142
    %v168 = vunpack.c.l.b16 %v143
    %v169 = vunpack.c.h.b16 %v143
    %v170 = vunpack.c.l.b16 %v144
    %v171 = vunpack.c.l.b16 %v145
    %v172 = vunpack.c.h.b16 %v145
    %v173 = vunpack.c.l.b16 %v146
    %v174 = vunpack.c.l.b16 %v147
    %v175 = vunpack.c.h.b16 %v147
    %v176 = vunpack.c.l.b16 %v148
    %v177 = vpack.c.b16 %v168, %v165
    %v178 = vpack.c.b16 %v169, %v166
    %v179 = vpack.c.b16 %v170, %v167
    %v180 = vpack.c.b16 %v174, %v171
    %v181 = vpack.c.b16 %v175, %v172
    %v182 = vpack.c.b16 %v176, %v173
    %vm189 = vcmask 261120
    %v191 = vsel %vm189, %v140, 0
    %193 = vmatpush.bf16.msra.mxu0 0
    %194 = vmatpush.bf16.msra.mxu0 0
    %195 = vmatpush.bf16.msra.mxu0 0
    %196 = vmatpush.bf16.msra.mxu0 0
    %197 = vmatpush.bf16.msra.mxu0 0
    %198 = vmatpush.bf16.msra.mxu0 0
    %199 = vmatpush.bf16.msra.mxu0 %v180
    %200 = vmatpush.bf16.msra.mxu0 %v177
    %201 = vmatmul.bf16.gmra.mxu0 %v191
    %v202 = vpop.f32.mrf.mxu0
    %v203 = vadd.f32 %v151, %v202
    %v204 = vpop.f32.mrf.mxu0
    %205 = vdwg.mxu0
    %206 = vmatpush.bf16.msra.mxu0 0
    %207 = vmatpush.bf16.msra.mxu0 0
    %208 = vmatpush.bf16.msra.mxu0 0
    %209 = vmatpush.bf16.msra.mxu0 0
    %210 = vmatpush.bf16.msra.mxu0 0
    %211 = vmatpush.bf16.msra.mxu0 0
    %212 = vmatpush.bf16.msra.mxu0 %v181
    %213 = vmatpush.bf16.msra.mxu0 %v178
    %214 = vmatmul.bf16.gmra.mxu0 %v191
    %v215 = vpop.f32.mrf.mxu0
    %v216 = vadd.f32 %v152, %v215
    %v217 = vpop.f32.mrf.mxu0
    %218 = vdwg.mxu0
    %219 = vmatpush.bf16.msra.mxu0 0
    %220 = vmatpush.bf16.msra.mxu0 0
    %221 = vmatpush.bf16.msra.mxu0 0
    %222 = vmatpush.bf16.msra.mxu0 0
    %223 = vmatpush.bf16.msra.mxu0 0
    %224 = vmatpush.bf16.msra.mxu0 0
    %225 = vmatpush.bf16.msra.mxu0 %v182
    %226 = vmatpush.bf16.msra.mxu0 %v179
    %227 = vmatmul.bf16.gmra.mxu0 %v191
    %v228 = vpop.f32.mrf.mxu0
    %v229 = vadd.f32 %v153, %v228
    %v230 = vpop.f32.mrf.mxu0
    %231 = vdwg.mxu0
    %v232 = vmul.f32 %v203, 0.5
    %v233 = vmul.f32 %v216, 0.5
    %v234 = vtanh.pop %v232
    %v235 = vtanh.pop %v233
    %v236 = vmul.f32 %v234, 0.5
    %v237 = vmul.f32 %v235, 0.5
    %v238 = vadd.f32 %v236, 0.5
    %v239 = vadd.f32 %v237, 0.5
    %240 = vst [vmem:[#allocation11] sm:$0xff] %v238
    %241 = vst [vmem:[#allocation11 + $0x8] sm:$0xff] %v239
    %242 = vmax.xlane.f32.xlu0 %v229
    %v243 = vpop.xlane.xlu0 %242
    %v244 = vsub.f32 %v229, %v243
    %v245 = vmul.f32 %v244, 1.442695
    %v246 = vpow.pop %v245
    %247 = vadd.xlane.f32.xlu0 %v246
    %v248 = vpop.xlane.xlu0 %247
    %v249 = vrcp.pop %v248
    %v250 = vmul.f32 %v248, %v249
    %v251 = vsub.f32 1.0, %v250
    %v252 = vmul.f32 %v249, %v251
    %v253 = vadd.f32 %v249, %v252
    %vm254 = vweird.f32 %v248
    %vm255 = vweird.f32 %v249
    %vm256 = vmor %vm254, %vm255
    %v257 = vsel %vm256, %v249, %v253
    %v258 = vand.u32 2147483647, %v248
    %vm259 = vcmp.eq.f32.partialorder %v258, 8.507059e+37
    %v260 = vand.u32 %v248, 2147483648
    %v261 = vor.u32 1.1754944e-38, %v260
    %v262 = vsel %vm259, %v261, %v257
    %v263 = vmul.f32 %v246, %v262
    %264 = vst [vmem:[#allocation11 + $0x10] sm:$0xff] %v263
    // Predicated region
    $region42: #{decoder_forward.1} parent=1 // pred_check
      _
    $region43: #{decoder_forward.1} parent=1 // pred_check_branch
      %266 = sbr.rel (0) target = $region45
    $region44: #{decoder_forward.1} parent=1 // pred_region
      %268 = vsyncadd [#allocation4], 0
      %s270 = sshll.u32 [#allocation11], 4
      %s271 = int_to_ptr.vmem [resolvable:$true] %s270
      %s272 = sshll.u32 %s5, 4
      %s273 = int_to_ptr.hbm [resolvable:$true] %s272
      %275 = dma.vmem_to_hbm [thread:$0]  %s271, 384, %s273, [#allocation4]
    $region45: #{decoder_forward.1} parent=1 // pred_fallthru
      _
    // Predicated region
    $region46: #{decoder_forward.1} parent=1 // pred_check
      _
    $region47: #{decoder_forward.1} parent=1 // pred_check_branch
      %277 = sbr.rel (0) target = $region49
    $region48: #{decoder_forward.1} parent=1 // pred_region
      %279 = dma.done [#allocation4], 384
    $region49: #{decoder_forward.1} parent=1 // pred_fallthru
      _
    %280 = vsyncpa [#allocation3], 1
    %281 = vsyncpa [#allocation6], 1
    %282 = vsyncpa [#allocation9], 1
    %283 = vsyncpa [#allocation4], 1

</llo_original>
